<compile_context>
chip_gen: v6e
topology: v6e:2x2x1
jax: 0.10.0
libtpu: 0.0.40
codegen_flags: <defaults>
</compile_context>

<pallas_src>
import functools

import jax
import jax.numpy as jnp
from jax.experimental import pallas as pl
from jax.experimental.pallas import tpu as pltpu


def _round_up(x, m):
    return (x + m - 1) // m * m


def _pad2d(x, rows, cols):
    return jnp.pad(x, ((0, rows - x.shape[0]), (0, cols - x.shape[1])))


def _vmem_limit_bytes():
    """Generation-aware scoped-VMEM budget: ~3/4 of physical, capped at 100 MiB.

    v5e/v6e: 128 MiB physical -> 96 MiB; v7x: 64 MiB -> 48 MiB.
    """
    default_cap = 64 * 1024 * 1024
    try:
        cap = int(getattr(pltpu.get_tpu_info(), "vmem_capacity_bytes",
                          default_cap))
    except Exception:
        cap = default_cap
    return int(min(cap * 3 // 4, 100 * 1024 * 1024))


# ------------------------------ fused layer kernel ---------------------------

def gcn_layer_kernel(seed_ref, h_ref, sn_ref, w_ref, a_ref, dn_ref, b_ref,
                     o_ref, p_vmem, acc_ref, *,
                     rate, training, layer_idx, apply_relu, tile_k):
    """One full GraphConv layer, fused projection + aggregation.

    grid = (row_tiles_i, k_tiles)  with the contraction axis k innermost.

    seed_ref : SMEM (1,) int32     PRNG seed (scalar prefetch)
    h_ref    : (TK, FinP)          node-feature tile (src rows; only read at i==0)
    sn_ref   : (TK, 1)   f32       src-side norm d_out^{-1/2} (only read at i==0)
    w_ref    : (FinP, FoutP) bf16  zero-padded weight
    a_ref    : (TN, TK)  int8      adjacency tile (dst rows x src cols)
    dn_ref   : (TN, 1)   f32       dst-side norm d_in^{-1/2}
    b_ref    : (1, FoutP) f32      zero-padded bias
    o_ref    : (TN, FoutP)         lane-dense output tile (bf16 / f32 last layer)
    p_vmem   : VMEM (N, FoutP) bf16 persistent projected features P
    acc_ref  : VMEM (TN, FoutP) f32 accumulator across the k axis
    """
    i = pl.program_id(0)
    k = pl.program_id(1)

    # ---- build P[k] = (dropout(H_k) * src_norm_k) @ W once per layer -------
    @pl.when(i == 0)
    def _():
        h = h_ref[...].astype(jnp.float32)
        if training and rate > 0.0 and layer_idx != 0:
            # per-(layer, k-tile) seed; keep-mask from raw uint32 bits vs an
            # integer threshold (no int->float convert / float compare chain).
            pltpu.prng_seed(seed_ref[0], layer_idx, k)
            bits = pltpu.bitcast(pltpu.prng_random_bits(h.shape), jnp.uint32)
            thr = jnp.uint32(min(int(rate * 4294967296.0), 0xFFFFFFFF))
            h = jnp.where(bits >= thr, h * (1.0 / (1.0 - rate)), 0.0)
        h_scaled = (h * sn_ref[...]).astype(jnp.bfloat16)
        p = jnp.dot(h_scaled, w_ref[...], preferred_element_type=jnp.float32)
        row0 = pl.multiple_of(k * tile_k, tile_k)
        p_vmem[pl.ds(row0, tile_k), :] = p.astype(p_vmem.dtype)

    # ---- aggregate: acc += A[i, k] @ P[k] (f32 VMEM accumulator) ------------
    @pl.when(k == 0)
    def _():
        acc_ref[...] = jnp.zeros_like(acc_ref)

    row0 = pl.multiple_of(k * tile_k, tile_k)
    a = a_ref[...].astype(jnp.bfloat16)          # int8 (exactly 0/1) -> bf16
    acc_ref[...] += jnp.dot(a, p_vmem[pl.ds(row0, tile_k), :],
                            preferred_element_type=jnp.float32)

    # ---- finalize: dst-norm scale + bias (+ ReLU) and lane-dense store ------
    @pl.when(k == pl.num_programs(1) - 1)
    def _():
        out = acc_ref[...] * dn_ref[...] + b_ref[...]
        if apply_relu:
            out = jnp.maximum(out, 0.0)
        o_ref[...] = out.astype(o_ref.dtype)


# --------------------------------- wrapper -----------------------------------

def gcn_layer(h, src_norm, dst_norm, adj_i8, w_pad, b_pad, seed_arr, *,
              rate, training, layer_idx, apply_relu, out_dtype,
              tile_n, tile_k):
    n_pad, fin_p = h.shape
    fout_p = w_pad.shape[1]
    assert n_pad % tile_n == 0 and n_pad % tile_k == 0

    vmem_limit = _vmem_limit_bytes()
    p_bytes = n_pad * fout_p * 2
    # TODO(synk): for graphs whose P (N x FoutP bf16) does not fit in VMEM,
    # fall back to a two-kernel path that streams P through HBM.
    if p_bytes > vmem_limit // 2:
        raise ValueError(
            f"persistent P scratch ({p_bytes} B) exceeds the VMEM budget "
            f"({vmem_limit} B); graph too large for the fused single-call path.")

    kernel = functools.partial(
        gcn_layer_kernel, rate=rate, training=training, layer_idx=layer_idx,
        apply_relu=apply_relu, tile_k=tile_k)

    # H / src_norm are only consumed on the i == 0 pass (P build); for i > 0
    # the index map parks on block 0, so consecutive grid steps skip their DMA.
    def src_map(i, k, s):
        return (k * (1 - jnp.minimum(i, 1)), 0)

    return pl.pallas_call(
        kernel,
        out_shape=jax.ShapeDtypeStruct((n_pad, fout_p), out_dtype),
        grid_spec=pltpu.PrefetchScalarGridSpec(
            num_scalar_prefetch=1,
            grid=(n_pad // tile_n, n_pad // tile_k),
            in_specs=[
                pl.BlockSpec((tile_k, fin_p), src_map),                  # H (src rows)
                pl.BlockSpec((tile_k, 1), src_map),                      # src norm
                pl.BlockSpec((fin_p, fout_p), lambda i, k, s: (0, 0)),   # W (constant)
                pl.BlockSpec((tile_n, tile_k), lambda i, k, s: (i, k)),  # A int8 tile
                pl.BlockSpec((tile_n, 1), lambda i, k, s: (i, 0)),       # dst norm
                pl.BlockSpec((1, fout_p), lambda i, k, s: (0, 0)),       # bias (constant)
            ],
            out_specs=pl.BlockSpec((tile_n, fout_p), lambda i, k, s: (i, 0)),
            scratch_shapes=[
                pltpu.VMEM((n_pad, fout_p), jnp.bfloat16),   # persistent P
                pltpu.VMEM((tile_n, fout_p), jnp.float32),   # row-tile accumulator
            ],
        ),
        compiler_params=pltpu.CompilerParams(
            # The i (row) axis must stay "arbitrary": P is built on the i == 0
            # pass, so a megacore-parallel split of i would leave the second
            # TensorCore reading an uninitialized P scratch (v7x).
            dimension_semantics=("arbitrary", "arbitrary"),
            vmem_limit_bytes=vmem_limit),
    )(seed_arr, h, src_norm, w_pad, adj_i8, dst_norm, b_pad)


def init_gcn_params(key, in_feats, n_classes, size_hidden, n_layers):
    """GraphConv: xavier_uniform weight, zero bias (DGL reset_parameters)."""
    dims = [in_feats] + [size_hidden] * n_layers + [n_classes]
    params = []
    for li in range(len(dims) - 1):
        key, sub = jax.random.split(key)
        fan_in, fan_out = dims[li], dims[li + 1]
        bound = (6.0 / (fan_in + fan_out)) ** 0.5
        w = jax.random.uniform(sub, (fan_in, fan_out), jnp.float32,
                               minval=-bound, maxval=bound)
        b = jnp.zeros((1, fan_out), jnp.float32)
        params.append((w, b))
    return params


def gcn_forward(adj, features, params, *, dropout_rate, training=False,
                seed=0, tile_n=256, tile_k=1024):
    """Matches GCN.forward: dropout before every layer except the first,
    ReLU (activation) on every GraphConv except the last."""
    n = adj.shape[0]
    n_pad = _round_up(n, 128)

    def pick_tile(target):
        t = min(_round_up(target, 128), n_pad)
        while n_pad % t:        # n_pad is a multiple of 128 -> always terminates
            t -= 128
        return t

    tile_n = pick_tile(tile_n)
    tile_k = pick_tile(tile_k)

    # DGL norm='both': src out-degree (column sums) / dst in-degree (row sums),
    # clamped to >= 1 (self-loops are added by the caller).
    out_deg = jnp.maximum(adj.sum(axis=0), 1.0)
    in_deg = jnp.maximum(adj.sum(axis=1), 1.0)
    src_norm = _pad2d(jax.lax.rsqrt(out_deg).reshape(n, 1).astype(jnp.float32),
                      n_pad, 1)
    dst_norm = _pad2d(jax.lax.rsqrt(in_deg).reshape(n, 1).astype(jnp.float32),
                      n_pad, 1)

    # adjacency lives in HBM as int8 (values are exactly 0/1); it is cast to
    # bf16 tile-by-tile inside the kernel, halving the HBM-bound A stream.
    adj_i8 = _pad2d(adj, n_pad, n_pad).astype(jnp.int8)

    seed_arr = jnp.asarray([seed], jnp.int32)

    n_total = len(params)
    n_classes = params[-1][0].shape[1]

    # zero-pad the feature dim to a lane-dense multiple of 128
    h = _pad2d(features.astype(jnp.float32), n_pad,
               _round_up(features.shape[1], 128))

    for li, (w, b) in enumerate(params):
        fin, fout = w.shape
        fin_p, fout_p = _round_up(fin, 128), _round_up(fout, 128)
        w_pad = _pad2d(w, fin_p, fout_p).astype(jnp.bfloat16)
        b_pad = _pad2d(b, 1, fout_p).astype(jnp.float32)
        is_last = (li == n_total - 1)
        h = gcn_layer(h, src_norm, dst_norm, adj_i8, w_pad, b_pad, seed_arr,
                      rate=dropout_rate, training=training, layer_idx=li,
                      apply_relu=not is_last,
                      out_dtype=jnp.float32 if is_last else jnp.bfloat16,
                      tile_n=tile_n, tile_k=tile_k)
    return h[:n, :n_classes]


def gcn_reference(adj, features, params):
    """Pure-JAX f32 reference (eval mode) with identical semantics."""
    out_deg = jnp.maximum(adj.sum(axis=0), 1.0)
    in_deg = jnp.maximum(adj.sum(axis=1), 1.0)
    src_norm = jax.lax.rsqrt(out_deg)[:, None]
    dst_norm = jax.lax.rsqrt(in_deg)[:, None]
    h = features
    for li, (w, b) in enumerate(params):
        h = (dst_norm * (adj @ (h * src_norm))) @ w + b
        if li != len(params) - 1:
            h = jnp.maximum(h, 0.0)
    return h


# ----------------------------------- main ------------------------------------

if __name__ == "__main__":
    key = jax.random.PRNGKey(0)

    N = 128           # number of graph nodes
    in_feats = 16
    size_hidden = 32
    n_classes = 8
    n_layers = 2      # -> 3 GraphConv layers total, as in the module
    dropout_rate = 0.5

    k_adj, k_feat, k_param = jax.random.split(key, 3)

    # Random sparse-ish graph as a dense adjacency; add self-loops so every
    # node has nonzero in-degree (allow_zero_in_degree=False).
    adj = (jax.random.uniform(k_adj, (N, N)) < 0.05).astype(jnp.float32)
    adj = jnp.maximum(adj, jnp.eye(N, dtype=jnp.float32))

    features = jax.random.normal(k_feat, (N, in_feats), jnp.float32)
    params = init_gcn_params(k_param, in_feats, n_classes, size_hidden,
                             n_layers)

    # eval-mode forward (deterministic); the training-mode dropout path is
    # implemented in-kernel via the TPU PRNG and only compiles in when
    # training=True and rate > 0.
    out = gcn_forward(adj, features, params, dropout_rate=dropout_rate,
                      training=False)
    out = jax.block_until_ready(out)

    assert out.shape == (N, n_classes), out.shape
    assert bool(jnp.all(jnp.isfinite(out)))

    ref = gcn_reference(adj, features, params)
    assert bool(jnp.allclose(out, ref, rtol=5e-2, atol=5e-2)), (
        "max abs err = %f" % float(jnp.max(jnp.abs(out - ref))))

    print("KERNEL_OK")
</pallas_src>

<mosaic_0001>
module attributes {stable_mosaic.version = 11 : i64} {
  func.func @gcn_layer_kernel(%arg0: i32, %arg1: i32, %arg2: memref<1xi32, #tpu.memory_space<smem>>, %arg3: memref<128x128xf32, #tpu.memory_space<vmem>>, %arg4: memref<128x1xf32, #tpu.memory_space<vmem>>, %arg5: memref<128x128xbf16, #tpu.memory_space<vmem>>, %arg6: memref<128x128xi8, #tpu.memory_space<vmem>>, %arg7: memref<128x1xf32, #tpu.memory_space<vmem>>, %arg8: memref<1x128xf32, #tpu.memory_space<vmem>>, %arg9: memref<128x128xbf16, #tpu.memory_space<vmem>>, %arg10: memref<128x128xbf16, #tpu.memory_space<vmem>>, %arg11: memref<128x128xf32, #tpu.memory_space<vmem>>) attributes {dimension_semantics = [#tpu.dimension_semantics<arbitrary>, #tpu.dimension_semantics<arbitrary>], iteration_bounds = array<i64: 1, 1>, scalar_prefetch = 1 : i64, scratch_operands = 2 : i64, tpu.core_type = #tpu.core_type<tc>, window_params = [{transform_indices = @transform_0, window_bounds = array<i64: 128, 128>}, {transform_indices = @transform_1, window_bounds = array<i64: 128, 1>}, {pipeline_mode = #tpu.pipeline_mode<synchronous>, transform_indices = @transform_2, window_bounds = array<i64: 128, 128>}, {transform_indices = @transform_3, window_bounds = array<i64: 128, 128>}, {transform_indices = @transform_4, window_bounds = array<i64: 128, 1>}, {pipeline_mode = #tpu.pipeline_mode<synchronous>, transform_indices = @transform_5, window_bounds = array<i64: 1, 128>}, {transform_indices = @transform_6, window_bounds = array<i64: 128, 128>}]} {
    %c0_i32 = arith.constant 0 : i32
    %0 = arith.cmpi eq, %arg0, %c0_i32 : i32
    %1 = arith.extui %0 : i1 to i32
    %c0_i32_0 = arith.constant 0 : i32
    %2 = arith.cmpi ne, %1, %c0_i32_0 : i32
    scf.if %2 {
      %c0_11 = arith.constant 0 : index
      %c0_12 = arith.constant 0 : index
      %19 = vector.load %arg3[%c0_11, %c0_12] : memref<128x128xf32, #tpu.memory_space<vmem>>, vector<128x128xf32>
      %c0_13 = arith.constant 0 : index
      %c0_14 = arith.constant 0 : index
      %20 = vector.load %arg4[%c0_13, %c0_14] : memref<128x1xf32, #tpu.memory_space<vmem>>, vector<128x1xf32>
      %21 = vector.broadcast %20 : vector<128x1xf32> to vector<128x128xf32>
      %22 = arith.mulf %19, %21 : vector<128x128xf32>
      %23 = arith.truncf %22 : vector<128x128xf32> to vector<128x128xbf16>
      %c0_15 = arith.constant 0 : index
      %c0_16 = arith.constant 0 : index
      %24 = vector.load %arg5[%c0_15, %c0_16] : memref<128x128xbf16, #tpu.memory_space<vmem>>, vector<128x128xbf16>
      %cst_17 = arith.constant dense<0.000000e+00> : vector<128x128xf32>
      %25 = tpu.matmul %23, %24, %cst_17 {dimension_numbers = #tpu.dot_dimension_numbers<[1], [0], [0], [1], [0, 0, 1, 1], [], []>} : vector<128x128xbf16>, vector<128x128xbf16>, vector<128x128xf32> -> vector<128x128xf32>
      %c128_i32_18 = arith.constant 128 : i32
      %26 = arith.muli %arg1, %c128_i32_18 : i32
      %27 = tpu.assume_multiple %26, 128 : i32
      %28 = arith.truncf %25 : vector<128x128xf32> to vector<128x128xbf16>
      %29 = arith.index_cast %27 : i32 to index
      %c0_19 = arith.constant 0 : index
      %30 = vector.load %arg10[%29, %c0_19] : memref<128x128xbf16, #tpu.memory_space<vmem>>, vector<128x128xbf16>
      tpu.vector_store %arg10[%29, %c0_19], %28 {strides = array<i32>} : memref<128x128xbf16, #tpu.memory_space<vmem>>, vector<128x128xbf16>,
    } else {
    }
    %c0_i32_1 = arith.constant 0 : i32
    %3 = arith.cmpi eq, %arg1, %c0_i32_1 : i32
    %4 = arith.extui %3 : i1 to i32
    %c0_i32_2 = arith.constant 0 : i32
    %5 = arith.cmpi ne, %4, %c0_i32_2 : i32
    scf.if %5 {
      %cst_11 = arith.constant 0.000000e+00 : f32
      %19 = vector.broadcast %cst_11 : f32 to vector<128x128xf32>
      %c0_12 = arith.constant 0 : index
      %c0_13 = arith.constant 0 : index
      %20 = vector.load %arg11[%c0_12, %c0_13] : memref<128x128xf32, #tpu.memory_space<vmem>>, vector<128x128xf32>
      tpu.vector_store %arg11[%c0_12, %c0_13], %19 {strides = array<i32>} : memref<128x128xf32, #tpu.memory_space<vmem>>, vector<128x128xf32>,
    } else {
    }
    %c128_i32 = arith.constant 128 : i32
    %6 = arith.muli %arg1, %c128_i32 : i32
    %7 = tpu.assume_multiple %6, 128 : i32
    %c0 = arith.constant 0 : index
    %c0_3 = arith.constant 0 : index
    %8 = vector.load %arg6[%c0, %c0_3] : memref<128x128xi8, #tpu.memory_space<vmem>>, vector<128x128xi8>
    %9 = arith.sitofp %8 : vector<128x128xi8> to vector<128x128xbf16>
    %c0_4 = arith.constant 0 : index
    %c0_5 = arith.constant 0 : index
    %10 = vector.load %arg11[%c0_4, %c0_5] : memref<128x128xf32, #tpu.memory_space<vmem>>, vector<128x128xf32>
    %11 = arith.index_cast %7 : i32 to index
    %c0_6 = arith.constant 0 : index
    %12 = vector.load %arg10[%11, %c0_6] : memref<128x128xbf16, #tpu.memory_space<vmem>>, vector<128x128xbf16>
    %cst = arith.constant dense<0.000000e+00> : vector<128x128xf32>
    %13 = tpu.matmul %9, %12, %cst {dimension_numbers = #tpu.dot_dimension_numbers<[1], [0], [0], [1], [0, 0, 1, 1], [], []>} : vector<128x128xbf16>, vector<128x128xbf16>, vector<128x128xf32> -> vector<128x128xf32>
    %14 = arith.addf %10, %13 : vector<128x128xf32>
    %c0_7 = arith.constant 0 : index
    %c0_8 = arith.constant 0 : index
    %15 = vector.load %arg11[%c0_7, %c0_8] : memref<128x128xf32, #tpu.memory_space<vmem>>, vector<128x128xf32>
    tpu.vector_store %arg11[%c0_7, %c0_8], %14 {strides = array<i32>} : memref<128x128xf32, #tpu.memory_space<vmem>>, vector<128x128xf32>,
    %c0_i32_9 = arith.constant 0 : i32
    %16 = arith.cmpi eq, %arg1, %c0_i32_9 : i32
    %17 = arith.extui %16 : i1 to i32
    %c0_i32_10 = arith.constant 0 : i32
    %18 = arith.cmpi ne, %17, %c0_i32_10 : i32
    scf.if %18 {
      %c0_11 = arith.constant 0 : index
      %c0_12 = arith.constant 0 : index
      %19 = vector.load %arg11[%c0_11, %c0_12] : memref<128x128xf32, #tpu.memory_space<vmem>>, vector<128x128xf32>
      %c0_13 = arith.constant 0 : index
      %c0_14 = arith.constant 0 : index
      %20 = vector.load %arg7[%c0_13, %c0_14] : memref<128x1xf32, #tpu.memory_space<vmem>>, vector<128x1xf32>
      %21 = vector.broadcast %20 : vector<128x1xf32> to vector<128x128xf32>
      %22 = arith.mulf %19, %21 : vector<128x128xf32>
      %c0_15 = arith.constant 0 : index
      %c0_16 = arith.constant 0 : index
      %23 = vector.load %arg8[%c0_15, %c0_16] : memref<1x128xf32, #tpu.memory_space<vmem>>, vector<1x128xf32>
      %24 = vector.broadcast %23 : vector<1x128xf32> to vector<128x128xf32>
      %25 = arith.addf %22, %24 : vector<128x128xf32>
      %cst_17 = arith.constant 0.000000e+00 : f32
      %26 = vector.broadcast %cst_17 : f32 to vector<128x128xf32>
      %27 = arith.maximumf %25, %26 : vector<128x128xf32>
      %28 = arith.truncf %27 : vector<128x128xf32> to vector<128x128xbf16>
      %c0_18 = arith.constant 0 : index
      %c0_19 = arith.constant 0 : index
      %29 = vector.load %arg9[%c0_18, %c0_19] : memref<128x128xbf16, #tpu.memory_space<vmem>>, vector<128x128xbf16>
      tpu.vector_store %arg9[%c0_18, %c0_19], %28 {strides = array<i32>} : memref<128x128xbf16, #tpu.memory_space<vmem>>, vector<128x128xbf16>,
    } else {
    }
    return
  }
  func.func @transform_0(%arg0: i32, %arg1: i32, %arg2: memref<1xi32, #tpu.memory_space<smem>>) -> (i32, i32) {
    %c1_i32 = arith.constant 1 : i32
    %0 = arith.minsi %arg0, %c1_i32 : i32
    %c1_i32_0 = arith.constant 1 : i32
    %1 = arith.subi %c1_i32_0, %0 : i32
    %2 = arith.muli %arg1, %1 : i32
    %c0_i32 = arith.constant 0 : i32
    %c0_i32_1 = arith.constant 0 : i32
    return %2, %c0_i32 : i32, i32
  }
  func.func @transform_1(%arg0: i32, %arg1: i32, %arg2: memref<1xi32, #tpu.memory_space<smem>>) -> (i32, i32) {
    %c1_i32 = arith.constant 1 : i32
    %0 = arith.minsi %arg0, %c1_i32 : i32
    %c1_i32_0 = arith.constant 1 : i32
    %1 = arith.subi %c1_i32_0, %0 : i32
    %2 = arith.muli %arg1, %1 : i32
    %c0_i32 = arith.constant 0 : i32
    %c0_i32_1 = arith.constant 0 : i32
    return %2, %c0_i32 : i32, i32
  }
  func.func @transform_2(%arg0: i32, %arg1: i32, %arg2: memref<1xi32, #tpu.memory_space<smem>>) -> (i32, i32) {
    %c0_i32 = arith.constant 0 : i32
    %c0_i32_0 = arith.constant 0 : i32
    %c0_i32_1 = arith.constant 0 : i32
    return %c0_i32, %c0_i32_0 : i32, i32
  }
  func.func @transform_3(%arg0: i32, %arg1: i32, %arg2: memref<1xi32, #tpu.memory_space<smem>>) -> (i32, i32) {
    %c0_i32 = arith.constant 0 : i32
    return %arg0, %arg1 : i32, i32
  }
  func.func @transform_4(%arg0: i32, %arg1: i32, %arg2: memref<1xi32, #tpu.memory_space<smem>>) -> (i32, i32) {
    %c0_i32 = arith.constant 0 : i32
    %c0_i32_0 = arith.constant 0 : i32
    return %arg0, %c0_i32 : i32, i32
  }
  func.func @transform_5(%arg0: i32, %arg1: i32, %arg2: memref<1xi32, #tpu.memory_space<smem>>) -> (i32, i32) {
    %c0_i32 = arith.constant 0 : i32
    %c0_i32_0 = arith.constant 0 : i32
    %c0_i32_1 = arith.constant 0 : i32
    return %c0_i32, %c0_i32_0 : i32, i32
  }
  func.func @transform_6(%arg0: i32, %arg1: i32, %arg2: memref<1xi32, #tpu.memory_space<smem>>) -> (i32, i32) {
    %c0_i32 = arith.constant 0 : i32
    %c0_i32_0 = arith.constant 0 : i32
    return %arg0, %c0_i32 : i32, i32
  }
}

</mosaic_0001>

<llo_original>
// kernel: tpu_custom_call.1
$region0: #{tpu_custom_call.1}
  #allocation0 [shape = 'u32[]', space=smem, size = 0x4, offset = 0x4, fixed_abs, tag = 'smem constant byte address 0x4 - core index']
  #allocation1 [shape = 'u32[144,128]{1,0:T(1,128)}', space=vmem, size = 0x12000, scoped, tag = 'internal scratch']
  #allocation2 [shape = 'bf16[128,128]{1,0:T(8,128)(2,1)}', space=vmem, size = 0x8000, scoped, tag = 'scratch operand']
  #allocation3 [shape = 'f32[128,128]{1,0:T(8,128)}', space=vmem, size = 0x10000, scoped, tag = 'scratch operand']
  #allocation4 [shape = 's32[1]{0}', space=sflag, size = 0x4, scoped, tag = 'scoped memory for tpu_custom_call.1']
  #allocation5 [shape = 's32[1]{0:T(128)S(6)}', space=smem, size = 0x200, scoped, tag = 'prefetched SMEM operand 0']
  %s0 = inlined_call_operand.<no memory space> [shape: s32[1], index: 0, kind: input, shape index: {}]
  %s1 = inlined_call_operand.vmem [shape: f32[128,128], index: 1, kind: input, shape index: {}]
  %s2 = inlined_call_operand.vmem [shape: f32[128,1], index: 2, kind: input, shape index: {}]
  %s3 = inlined_call_operand.vmem [shape: bf16[128,128], index: 3, kind: input, shape index: {}]
  %s4 = inlined_call_operand.vmem [shape: s8[128,128], index: 4, kind: input, shape index: {}]
  %s5 = inlined_call_operand.vmem [shape: f32[128,1], index: 5, kind: input, shape index: {}]
  %s6 = inlined_call_operand.vmem [shape: f32[1,128], index: 6, kind: input, shape index: {}]
  %s7 = inlined_call_operand.hbm [shape: bf16[128,128], index: 7, kind: output, shape index: {}]
  %s8 = sld [smem:[#allocation0]]
  $region46: #{tpu_custom_call.1} parent=0
    _
  %s10 = ssub.s32 1, %s8
  %s11 = scalar_select 0, %s10, %s8
  %12 = sst [smem:[#allocation5]] %s0
  $region1: #{tpu_custom_call.1} parent=0
    #allocation6 [shape = 'u8[32768]{0}', space=vmem, size = 0x8000, scoped, tag = 'output window, operand 0, single buffered']
    #allocation7 [shape = 's32[1]{0}', space=sflag, size = 0x4, scoped, tag = 'scoped memory for tpu_custom_call.1']
    %13 = vsyncpa [#allocation7], 0
    // Predicated region
    $region2: #{tpu_custom_call.1} parent=1 // pred_check
      _
    $region3: #{tpu_custom_call.1} parent=1 // pred_check_branch
      %15 = sbr.rel (0) target = $region5
    $region4: #{tpu_custom_call.1} parent=1 // pred_region
      %s16 = ssub.s32 1, 0
      %s17 = smul.u32 0, %s16
      %s18 = smul.u32 16, %s17
      %p19 = scmp.lt.s32.totalorder %s18, 15
      %s20 = scalar_select %p19, %s18, 15
      %s21 = smul.addr %s20, 8
      %s22 = scalar_lea.vmem %s1, %s21
      %s23 = ssub.s32 1, 0
      %s24 = smul.u32 0, %s23
      %s25 = smul.u32 16, %s24
    $region5: #{tpu_custom_call.1} parent=1 // pred_fallthru
      _
    // Predicated region
    $region6: #{tpu_custom_call.1} parent=1 // pred_check
      _
    $region7: #{tpu_custom_call.1} parent=1 // pred_check_branch
      %27 = sbr.rel (0) target = $region9
    $region8: #{tpu_custom_call.1} parent=1 // pred_region
      %s28 = ssub.s32 1, 0
      %s29 = smul.u32 0, %s28
      %s30 = smul.u32 16, %s29
      %p31 = scmp.lt.s32.totalorder %s30, 15
      %s32 = scalar_select %p31, %s30, 15
      %s33 = smul.addr %s32, 8
      %s34 = scalar_lea.vmem %s2, %s33
      %s35 = ssub.s32 1, 0
      %s36 = smul.u32 0, %s35
      %s37 = smul.u32 16, %s36
    $region9: #{tpu_custom_call.1} parent=1 // pred_fallthru
      _
    // Predicated region
    $region10: #{tpu_custom_call.1} parent=1 // pred_check
      _
    $region11: #{tpu_custom_call.1} parent=1 // pred_check_branch
      %39 = sbr.rel (0) target = $region13
    $region12: #{tpu_custom_call.1} parent=1 // pred_region
      _
    $region13: #{tpu_custom_call.1} parent=1 // pred_fallthru
      _
    // Predicated region
    $region14: #{tpu_custom_call.1} parent=1 // pred_check
      _
    $region15: #{tpu_custom_call.1} parent=1 // pred_check_branch
      %41 = sbr.rel (0) target = $region17
    $region16: #{tpu_custom_call.1} parent=1 // pred_region
      _
    $region17: #{tpu_custom_call.1} parent=1 // pred_fallthru
      _
    // Predicated region
    $region18: #{tpu_custom_call.1} parent=1 // pred_check
      _
    $region19: #{tpu_custom_call.1} parent=1 // pred_check_branch
      %43 = sbr.rel (0) target = $region21
    $region20: #{tpu_custom_call.1} parent=1 // pred_region
      _
    $region21: #{tpu_custom_call.1} parent=1 // pred_fallthru
      _
    // Predicated region
    $region22: #{tpu_custom_call.1} parent=1 // pred_check
      _
    $region23: #{tpu_custom_call.1} parent=1 // pred_check_branch
      %45 = sbr.rel (0) target = $region25
    $region24: #{tpu_custom_call.1} parent=1 // pred_region
      _
    $region25: #{tpu_custom_call.1} parent=1 // pred_fallthru
      _
    %s46 = ssub.s32 1, 0
    %s47 = smul.u32 0, %s46
    %s48 = smul.u32 16, %s47
    %p49 = scmp.lt.s32.totalorder %s48, 15
    %s50 = scalar_select %p49, %s48, 15
    %s51 = smul.addr %s50, 8
    %s52 = scalar_lea.vmem %s1, %s51
    %s53 = ssub.s32 1, 0
    %s54 = smul.u32 0, %s53
    %s55 = smul.u32 16, %s54
    %p56 = scmp.lt.s32.totalorder %s55, 15
    %s57 = scalar_select %p56, %s55, 15
    %s58 = smul.addr %s57, 8
    %s59 = scalar_lea.vmem %s2, %s58
    %s60 = ssub.s32 1, 0
    %s61 = smul.u32 0, %s60
    %s62 = smul.u32 16, %s61
    %p63 = scmp.lt.s32.totalorder %s62, 15
    %s64 = scalar_select %p63, %s62, 15
    %s65 = smul.addr %s64, 8
    %s66 = scalar_lea.vmem %s1, %s65
    %s67 = ssub.s32 1, 0
    %s68 = smul.u32 0, %s67
    %s69 = smul.u32 16, %s68
    %s70 = ssub.s32 1, 0
    %s71 = smul.u32 0, %s70
    %s72 = smul.u32 16, %s71
    %p73 = scmp.lt.s32.totalorder %s72, 15
    %s74 = scalar_select %p73, %s72, 15
    %s75 = smul.addr %s74, 8
    %s76 = scalar_lea.vmem %s2, %s75
    %s77 = ssub.s32 1, 0
    %s78 = smul.u32 0, %s77
    %s79 = smul.u32 16, %s78
    %p81 = scmp.eq.s32.totalorder 0, 0
    // Predicated region
    $region26: #{tpu_custom_call.1} parent=1 // pred_check
      %p82 = pneg %p81
    $region27: #{tpu_custom_call.1} parent=1 // pred_check_branch
      %84 = sbr.rel (%p82) target = $region29
    $region28: #{tpu_custom_call.1} parent=1 // pred_region
      %v85 = vld [vmem:[%s66] sm:$0xff]
      %v86 = vld [vmem:[%s66 + $0x8] sm:$0xff]
      %v87 = vld [vmem:[%s66 + $0x10] sm:$0xff]
      %v88 = vld [vmem:[%s66 + $0x18] sm:$0xff]
      %v89 = vld [vmem:[%s66 + $0x20] sm:$0xff]
      %v90 = vld [vmem:[%s66 + $0x28] sm:$0xff]
      %v91 = vld [vmem:[%s66 + $0x30] sm:$0xff]
      %v92 = vld [vmem:[%s66 + $0x38] sm:$0xff]
      %v93 = vld [vmem:[%s66 + $0x40] sm:$0xff]
      %v94 = vld [vmem:[%s66 + $0x48] sm:$0xff]
      %v95 = vld [vmem:[%s66 + $0x50] sm:$0xff]
      %v96 = vld [vmem:[%s66 + $0x58] sm:$0xff]
      %v97 = vld [vmem:[%s66 + $0x60] sm:$0xff]
      %v98 = vld [vmem:[%s66 + $0x68] sm:$0xff]
      %v99 = vld [vmem:[%s66 + $0x70] sm:$0xff]
      %v100 = vld [vmem:[%s66 + $0x78] sm:$0xff]
      %v101 = vld [vmem:[%s76] sm:$0xff]
      %v102 = vld [vmem:[%s76 + $0x8] sm:$0xff]
      %v103 = vld [vmem:[%s76 + $0x10] sm:$0xff]
      %v104 = vld [vmem:[%s76 + $0x18] sm:$0xff]
      %v105 = vld [vmem:[%s76 + $0x20] sm:$0xff]
      %v106 = vld [vmem:[%s76 + $0x28] sm:$0xff]
      %v107 = vld [vmem:[%s76 + $0x30] sm:$0xff]
      %v108 = vld [vmem:[%s76 + $0x38] sm:$0xff]
      %v109 = vld [vmem:[%s76 + $0x40] sm:$0xff]
      %v110 = vld [vmem:[%s76 + $0x48] sm:$0xff]
      %v111 = vld [vmem:[%s76 + $0x50] sm:$0xff]
      %v112 = vld [vmem:[%s76 + $0x58] sm:$0xff]
      %v113 = vld [vmem:[%s76 + $0x60] sm:$0xff]
      %v114 = vld [vmem:[%s76 + $0x68] sm:$0xff]
      %v115 = vld [vmem:[%s76 + $0x70] sm:$0xff]
      %v116 = vld [vmem:[%s76 + $0x78] sm:$0xff]
      %118 = vset.pattern.permute.xlu0 0
      %119 = vperm.xlu0 %118, %v101
      %v120 = vpop.permute.xlu0 %119
      %123 = vset.pattern.permute.xlu0 0
      %124 = vperm.xlu0 %123, %v102
      %v125 = vpop.permute.xlu0 %124
      %128 = vset.pattern.permute.xlu0 0
      %129 = vperm.xlu0 %128, %v103
      %v130 = vpop.permute.xlu0 %129
      %133 = vset.pattern.permute.xlu0 0
      %134 = vperm.xlu0 %133, %v104
      %v135 = vpop.permute.xlu0 %134
      %138 = vset.pattern.permute.xlu0 0
      %139 = vperm.xlu0 %138, %v105
      %v140 = vpop.permute.xlu0 %139
      %143 = vset.pattern.permute.xlu0 0
      %144 = vperm.xlu0 %143, %v106
      %v145 = vpop.permute.xlu0 %144
      %148 = vset.pattern.permute.xlu0 0
      %149 = vperm.xlu0 %148, %v107
      %v150 = vpop.permute.xlu0 %149
      %153 = vset.pattern.permute.xlu0 0
      %154 = vperm.xlu0 %153, %v108
      %v155 = vpop.permute.xlu0 %154
      %158 = vset.pattern.permute.xlu0 0
      %159 = vperm.xlu0 %158, %v109
      %v160 = vpop.permute.xlu0 %159
      %163 = vset.pattern.permute.xlu0 0
      %164 = vperm.xlu0 %163, %v110
      %v165 = vpop.permute.xlu0 %164
      %168 = vset.pattern.permute.xlu0 0
      %169 = vperm.xlu0 %168, %v111
      %v170 = vpop.permute.xlu0 %169
      %173 = vset.pattern.permute.xlu0 0
      %174 = vperm.xlu0 %173, %v112
      %v175 = vpop.permute.xlu0 %174
      %178 = vset.pattern.permute.xlu0 0
      %179 = vperm.xlu0 %178, %v113
      %v180 = vpop.permute.xlu0 %179
      %183 = vset.pattern.permute.xlu0 0
      %184 = vperm.xlu0 %183, %v114
      %v185 = vpop.permute.xlu0 %184
      %188 = vset.pattern.permute.xlu0 0
      %189 = vperm.xlu0 %188, %v115
      %v190 = vpop.permute.xlu0 %189
      %193 = vset.pattern.permute.xlu0 0
      %194 = vperm.xlu0 %193, %v116
      %v195 = vpop.permute.xlu0 %194
      %v197 = vmul.f32 %v85, %v120
      %v198 = vmul.f32 %v86, %v125
      %v199 = vmul.f32 %v87, %v130
      %v200 = vmul.f32 %v88, %v135
      %v201 = vmul.f32 %v89, %v140
      %v202 = vmul.f32 %v90, %v145
      %v203 = vmul.f32 %v91, %v150
      %v204 = vmul.f32 %v92, %v155
      %v205 = vmul.f32 %v93, %v160
      %v206 = vmul.f32 %v94, %v165
      %v207 = vmul.f32 %v95, %v170
      %v208 = vmul.f32 %v96, %v175
      %v209 = vmul.f32 %v97, %v180
      %v210 = vmul.f32 %v98, %v185
      %v211 = vmul.f32 %v99, %v190
      %v212 = vmul.f32 %v100, %v195
      %v213 = vpack.c.bf16 %v198, %v197
      %v214 = vpack.c.bf16 %v200, %v199
      %v215 = vpack.c.bf16 %v202, %v201
      %v216 = vpack.c.bf16 %v204, %v203
      %v217 = vpack.c.bf16 %v206, %v205
      %v218 = vpack.c.bf16 %v208, %v207
      %v219 = vpack.c.bf16 %v210, %v209
      %v220 = vpack.c.bf16 %v212, %v211
      %v221 = vld [vmem:[%s3] sm:$0xf]
      %v222 = vld [vmem:[%s3 + $0x4] sm:$0xf]
      %v223 = vld [vmem:[%s3 + $0x8] sm:$0xf]
      %v224 = vld [vmem:[%s3 + $0xc] sm:$0xf]
      %v225 = vld [vmem:[%s3 + $0x10] sm:$0xf]
      %v226 = vld [vmem:[%s3 + $0x14] sm:$0xf]
      %v227 = vld [vmem:[%s3 + $0x18] sm:$0xf]
      %v228 = vld [vmem:[%s3 + $0x1c] sm:$0xf]
      %v229 = vld [vmem:[%s3 + $0x20] sm:$0xf]
      %v230 = vld [vmem:[%s3 + $0x24] sm:$0xf]
      %v231 = vld [vmem:[%s3 + $0x28] sm:$0xf]
      %v232 = vld [vmem:[%s3 + $0x2c] sm:$0xf]
      %v233 = vld [vmem:[%s3 + $0x30] sm:$0xf]
      %v234 = vld [vmem:[%s3 + $0x34] sm:$0xf]
      %v235 = vld [vmem:[%s3 + $0x38] sm:$0xf]
      %v236 = vld [vmem:[%s3 + $0x3c] sm:$0xf]
      %v253 = vunpack.c.l.b16 %v221
      %v254 = vunpack.c.l.b16 %v222
      %v255 = vunpack.c.l.b16 %v223
      %v256 = vunpack.c.l.b16 %v224
      %v257 = vunpack.c.l.b16 %v225
      %v258 = vunpack.c.l.b16 %v226
      %v259 = vunpack.c.l.b16 %v227
      %v260 = vunpack.c.l.b16 %v228
      %v261 = vunpack.c.l.b16 %v229
      %v262 = vunpack.c.l.b16 %v230
      %v263 = vunpack.c.l.b16 %v231
      %v264 = vunpack.c.l.b16 %v232
      %v265 = vunpack.c.l.b16 %v233
      %v266 = vunpack.c.l.b16 %v234
      %v267 = vunpack.c.l.b16 %v235
      %v268 = vunpack.c.l.b16 %v236
      %v269 = vpack.c.b16 %v254, %v253
      %v270 = vpack.c.b16 %v256, %v255
      %v271 = vpack.c.b16 %v258, %v257
      %v272 = vpack.c.b16 %v260, %v259
      %v273 = vpack.c.b16 %v262, %v261
      %v274 = vpack.c.b16 %v264, %v263
      %v275 = vpack.c.b16 %v266, %v265
      %v276 = vpack.c.b16 %v268, %v267
      %285 = vmatprep.subr.bf16.mxu0 0
      %286 = vmatpush1.bf16.msra.mxu0 %v276
      %287 = vmatprep.subr.bf16.mxu0 0
      %288 = vmatpush1.bf16.msra.mxu0 %v275
      %289 = vmatprep.subr.bf16.mxu0 0
      %290 = vmatpush1.bf16.msra.mxu0 %v274
      %291 = vmatprep.subr.bf16.mxu0 0
      %292 = vmatpush1.bf16.msra.mxu0 %v273
      %293 = vmatprep.subr.bf16.mxu0 0
      %294 = vmatpush1.bf16.msra.mxu0 %v272
      %295 = vmatprep.subr.bf16.mxu0 0
      %296 = vmatpush1.bf16.msra.mxu0 %v271
      %297 = vmatprep.subr.bf16.mxu0 0
      %298 = vmatpush1.bf16.msra.mxu0 %v270
      %299 = vmatprep.subr.bf16.mxu0 0
      %300 = vmatpush1.bf16.msra.mxu0 %v269
      %301 = vmatprep.subr.bf16.mxu0 0
      %302 = vmatpush2.bf16.msra.mxu0 0
      %303 = vmatprep.subr.bf16.mxu0 0
      %304 = vmatpush2.bf16.msra.mxu0 0
      %305 = vmatprep.subr.bf16.mxu0 0
      %306 = vmatpush2.bf16.msra.mxu0 0
      %307 = vmatprep.subr.bf16.mxu0 0
      %308 = vmatpush2.bf16.msra.mxu0 0
      %309 = vmatprep.subr.bf16.mxu0 0
      %310 = vmatpush2.bf16.msra.mxu0 0
      %311 = vmatprep.subr.bf16.mxu0 0
      %312 = vmatpush2.bf16.msra.mxu0 0
      %313 = vmatprep.subr.bf16.mxu0 0
      %314 = vmatpush2.bf16.msra.mxu0 0
      %315 = vmatprep.subr.bf16.mxu0 0
      %316 = vmatpush2.bf16.msra.mxu0 0
      %317 = vmatprep.mubr.bf16.mxu0 0
      %318 = vmatmul.mubr.bf16.gmra.mxu0 %v213
      %v319 = vpop.f32.mrf.mxu0
      %v320 = vadd.f32 0.0, %v319
      %v321 = vpop.f32.mrf.mxu0
      %v322 = vpop.f32.mrf.mxu0
      %v323 = vadd.f32 0.0, %v322
      %v324 = vpop.f32.mrf.mxu0
      %325 = vmatprep.mubr.bf16.mxu0 0
      %326 = vmatmul.mubr.bf16.gmra.mxu0 %v214
      %v327 = vpop.f32.mrf.mxu0
      %v328 = vadd.f32 0.0, %v327
      %v329 = vpop.f32.mrf.mxu0
      %v330 = vpop.f32.mrf.mxu0
      %v331 = vadd.f32 0.0, %v330
      %v332 = vpop.f32.mrf.mxu0
      %333 = vmatprep.mubr.bf16.mxu0 0
      %334 = vmatmul.mubr.bf16.gmra.mxu0 %v215
      %v335 = vpop.f32.mrf.mxu0
      %v336 = vadd.f32 0.0, %v335
      %v337 = vpop.f32.mrf.mxu0
      %v338 = vpop.f32.mrf.mxu0
      %v339 = vadd.f32 0.0, %v338
      %v340 = vpop.f32.mrf.mxu0
      %341 = vmatprep.mubr.bf16.mxu0 0
      %342 = vmatmul.mubr.bf16.gmra.mxu0 %v216
      %v343 = vpop.f32.mrf.mxu0
      %v344 = vadd.f32 0.0, %v343
      %v345 = vpop.f32.mrf.mxu0
      %v346 = vpop.f32.mrf.mxu0
      %v347 = vadd.f32 0.0, %v346
      %v348 = vpop.f32.mrf.mxu0
      %349 = vmatprep.mubr.bf16.mxu0 0
      %350 = vmatmul.mubr.bf16.gmra.mxu0 %v217
      %v351 = vpop.f32.mrf.mxu0
      %v352 = vadd.f32 0.0, %v351
      %v353 = vpop.f32.mrf.mxu0
      %v354 = vpop.f32.mrf.mxu0
      %v355 = vadd.f32 0.0, %v354
      %v356 = vpop.f32.mrf.mxu0
      %357 = vmatprep.mubr.bf16.mxu0 0
      %358 = vmatmul.mubr.bf16.gmra.mxu0 %v218
      %v359 = vpop.f32.mrf.mxu0
      %v360 = vadd.f32 0.0, %v359
      %v361 = vpop.f32.mrf.mxu0
      %v362 = vpop.f32.mrf.mxu0
      %v363 = vadd.f32 0.0, %v362
      %v364 = vpop.f32.mrf.mxu0
      %365 = vmatprep.mubr.bf16.mxu0 0
      %366 = vmatmul.mubr.bf16.gmra.mxu0 %v219
      %v367 = vpop.f32.mrf.mxu0
      %v368 = vadd.f32 0.0, %v367
      %v369 = vpop.f32.mrf.mxu0
      %v370 = vpop.f32.mrf.mxu0
      %v371 = vadd.f32 0.0, %v370
      %v372 = vpop.f32.mrf.mxu0
      %373 = vmatprep.mubr.bf16.mxu0 0
      %374 = vmatmul.mubr.bf16.gmra.mxu0 %v220
      %v375 = vpop.f32.mrf.mxu0
      %v376 = vadd.f32 0.0, %v375
      %v377 = vpop.f32.mrf.mxu0
      %v378 = vpop.f32.mrf.mxu0
      %v379 = vadd.f32 0.0, %v378
      %v380 = vpop.f32.mrf.mxu0
      %381 = vdwg.mxu0
      %s382 = smul.u32 0, 128
      %v383 = vpack.c.bf16 %v323, %v320
      %v384 = vpack.c.bf16 %v331, %v328
      %v385 = vpack.c.bf16 %v339, %v336
      %v386 = vpack.c.bf16 %v347, %v344
      %v387 = vpack.c.bf16 %v355, %v352
      %v388 = vpack.c.bf16 %v363, %v360
      %v389 = vpack.c.bf16 %v371, %v368
      %v390 = vpack.c.bf16 %v379, %v376
      %v399 = vunpack.c.l.b16 %v383
      %v400 = vunpack.c.h.b16 %v383
      %v401 = vunpack.c.l.b16 %v384
      %v402 = vunpack.c.h.b16 %v384
      %v403 = vunpack.c.l.b16 %v385
      %v404 = vunpack.c.h.b16 %v385
      %v405 = vunpack.c.l.b16 %v386
      %v406 = vunpack.c.h.b16 %v386
      %v407 = vunpack.c.l.b16 %v387
      %v408 = vunpack.c.h.b16 %v387
      %v409 = vunpack.c.l.b16 %v388
      %v410 = vunpack.c.h.b16 %v388
      %v411 = vunpack.c.l.b16 %v389
      %v412 = vunpack.c.h.b16 %v389
      %v413 = vunpack.c.l.b16 %v390
      %v414 = vunpack.c.h.b16 %v390
      %v415 = vpack.c.b16 %v399, %v399
      %v416 = vpack.c.b16 %v400, %v400
      %v417 = vpack.c.b16 %v401, %v401
      %v418 = vpack.c.b16 %v402, %v402
      %v419 = vpack.c.b16 %v403, %v403
      %v420 = vpack.c.b16 %v404, %v404
      %v421 = vpack.c.b16 %v405, %v405
      %v422 = vpack.c.b16 %v406, %v406
      %v423 = vpack.c.b16 %v407, %v407
      %v424 = vpack.c.b16 %v408, %v408
      %v425 = vpack.c.b16 %v409, %v409
      %v426 = vpack.c.b16 %v410, %v410
      %v427 = vpack.c.b16 %v411, %v411
      %v428 = vpack.c.b16 %v412, %v412
      %v429 = vpack.c.b16 %v413, %v413
      %v430 = vpack.c.b16 %v414, %v414
      %s447 = sshra.s32 %s382, 3
      %s448 = sand.u32 %s382, 7
      %s449 = smul.addr %s447, 4
      %s450 = scalar_lea.vmem [#allocation2], %s449
      %451 = vst [vmem:[%s450] sm:$0xf] %v415
      %452 = vst [vmem:[%s450 + $0x4] sm:$0xf] %v416
      %453 = vst [vmem:[%s450 + $0x8] sm:$0xf] %v417
      %454 = vst [vmem:[%s450 + $0xc] sm:$0xf] %v418
      %455 = vst [vmem:[%s450 + $0x10] sm:$0xf] %v419
      %456 = vst [vmem:[%s450 + $0x14] sm:$0xf] %v420
      %457 = vst [vmem:[%s450 + $0x18] sm:$0xf] %v421
      %458 = vst [vmem:[%s450 + $0x1c] sm:$0xf] %v422
      %459 = vst [vmem:[%s450 + $0x20] sm:$0xf] %v423
      %460 = vst [vmem:[%s450 + $0x24] sm:$0xf] %v424
      %461 = vst [vmem:[%s450 + $0x28] sm:$0xf] %v425
      %462 = vst [vmem:[%s450 + $0x2c] sm:$0xf] %v426
      %463 = vst [vmem:[%s450 + $0x30] sm:$0xf] %v427
      %464 = vst [vmem:[%s450 + $0x34] sm:$0xf] %v428
      %465 = vst [vmem:[%s450 + $0x38] sm:$0xf] %v429
      %466 = vst [vmem:[%s450 + $0x3c] sm:$0xf] %v430
    $region29: #{tpu_custom_call.1} parent=1 // pred_fallthru
      _
    %p467 = scmp.eq.s32.totalorder 0, 0
    // Predicated region
    $region30: #{tpu_custom_call.1} parent=1 // pred_check
      %p468 = pneg %p467
    $region31: #{tpu_custom_call.1} parent=1 // pred_check_branch
      %470 = sbr.rel (%p468) target = $region33
    $region32: #{tpu_custom_call.1} parent=1 // pred_region
      %471 = vst [vmem:[#allocation3] sm:$0xff] 0.0
      %472 = vst [vmem:[#allocation3 + $0x8] sm:$0xff] 0.0
      %473 = vst [vmem:[#allocation3 + $0x10] sm:$0xff] 0.0
      %474 = vst [vmem:[#allocation3 + $0x18] sm:$0xff] 0.0
      %475 = vst [vmem:[#allocation3 + $0x20] sm:$0xff] 0.0
      %476 = vst [vmem:[#allocation3 + $0x28] sm:$0xff] 0.0
      %477 = vst [vmem:[#allocation3 + $0x30] sm:$0xff] 0.0
      %478 = vst [vmem:[#allocation3 + $0x38] sm:$0xff] 0.0
      %479 = vst [vmem:[#allocation3 + $0x40] sm:$0xff] 0.0
      %480 = vst [vmem:[#allocation3 + $0x48] sm:$0xff] 0.0
      %481 = vst [vmem:[#allocation3 + $0x50] sm:$0xff] 0.0
      %482 = vst [vmem:[#allocation3 + $0x58] sm:$0xff] 0.0
      %483 = vst [vmem:[#allocation3 + $0x60] sm:$0xff] 0.0
      %484 = vst [vmem:[#allocation3 + $0x68] sm:$0xff] 0.0
      %485 = vst [vmem:[#allocation3 + $0x70] sm:$0xff] 0.0
      %486 = vst [vmem:[#allocation3 + $0x78] sm:$0xff] 0.0
    $region33: #{tpu_custom_call.1} parent=1 // pred_fallthru
      _
    %s487 = smul.u32 0, 128
    %v488 = vld [vmem:[%s4] sm:$0xff]
    %v489 = vld [vmem:[%s4 + $0x8] sm:$0xff]
    %v490 = vld [vmem:[%s4 + $0x10] sm:$0xff]
    %v491 = vld [vmem:[%s4 + $0x18] sm:$0xff]
    %v492 = vunpack.c.l.s8.bf16 %v488
    %v493 = vunpack.c.h.s8.bf16 %v488
    %v494 = vunpack.c.l.s8.bf16 %v489
    %v495 = vunpack.c.h.s8.bf16 %v489
    %v496 = vunpack.c.l.s8.bf16 %v490
    %v497 = vunpack.c.h.s8.bf16 %v490
    %v498 = vunpack.c.l.s8.bf16 %v491
    %v499 = vunpack.c.h.s8.bf16 %v491
    %v500 = vld [vmem:[#allocation3] sm:$0xff]
    %v501 = vld [vmem:[#allocation3 + $0x8] sm:$0xff]
    %v502 = vld [vmem:[#allocation3 + $0x10] sm:$0xff]
    %v503 = vld [vmem:[#allocation3 + $0x18] sm:$0xff]
    %v504 = vld [vmem:[#allocation3 + $0x20] sm:$0xff]
    %v505 = vld [vmem:[#allocation3 + $0x28] sm:$0xff]
    %v506 = vld [vmem:[#allocation3 + $0x30] sm:$0xff]
    %v507 = vld [vmem:[#allocation3 + $0x38] sm:$0xff]
    %v508 = vld [vmem:[#allocation3 + $0x40] sm:$0xff]
    %v509 = vld [vmem:[#allocation3 + $0x48] sm:$0xff]
    %v510 = vld [vmem:[#allocation3 + $0x50] sm:$0xff]
    %v511 = vld [vmem:[#allocation3 + $0x58] sm:$0xff]
    %v512 = vld [vmem:[#allocation3 + $0x60] sm:$0xff]
    %v513 = vld [vmem:[#allocation3 + $0x68] sm:$0xff]
    %v514 = vld [vmem:[#allocation3 + $0x70] sm:$0xff]
    %v515 = vld [vmem:[#allocation3 + $0x78] sm:$0xff]
    %s516 = sshra.s32 %s487, 3
    %s517 = sand.u32 %s487, 7
    %s518 = smul.addr %s516, 4
    %s519 = scalar_lea.vmem [#allocation2], %s518
    %v520 = vld [vmem:[%s519] sm:$0xf]
    %v521 = vld [vmem:[%s519 + $0x4] sm:$0xf]
    %v522 = vld [vmem:[%s519 + $0x8] sm:$0xf]
    %v523 = vld [vmem:[%s519 + $0xc] sm:$0xf]
    %v524 = vld [vmem:[%s519 + $0x10] sm:$0xf]
    %v525 = vld [vmem:[%s519 + $0x14] sm:$0xf]
    %v526 = vld [vmem:[%s519 + $0x18] sm:$0xf]
    %v527 = vld [vmem:[%s519 + $0x1c] sm:$0xf]
    %v528 = vld [vmem:[%s519 + $0x20] sm:$0xf]
    %v529 = vld [vmem:[%s519 + $0x24] sm:$0xf]
    %v530 = vld [vmem:[%s519 + $0x28] sm:$0xf]
    %v531 = vld [vmem:[%s519 + $0x2c] sm:$0xf]
    %v532 = vld [vmem:[%s519 + $0x30] sm:$0xf]
    %v533 = vld [vmem:[%s519 + $0x34] sm:$0xf]
    %v534 = vld [vmem:[%s519 + $0x38] sm:$0xf]
    %v535 = vld [vmem:[%s519 + $0x3c] sm:$0xf]
    %v552 = vunpack.c.l.b16 %v520
    %v553 = vunpack.c.l.b16 %v521
    %v554 = vunpack.c.l.b16 %v522
    %v555 = vunpack.c.l.b16 %v523
    %v556 = vunpack.c.l.b16 %v524
    %v557 = vunpack.c.l.b16 %v525
    %v558 = vunpack.c.l.b16 %v526
    %v559 = vunpack.c.l.b16 %v527
    %v560 = vunpack.c.l.b16 %v528
    %v561 = vunpack.c.l.b16 %v529
    %v562 = vunpack.c.l.b16 %v530
    %v563 = vunpack.c.l.b16 %v531
    %v564 = vunpack.c.l.b16 %v532
    %v565 = vunpack.c.l.b16 %v533
    %v566 = vunpack.c.l.b16 %v534
    %v567 = vunpack.c.l.b16 %v535
    %v568 = vpack.c.b16 %v553, %v552
    %v569 = vpack.c.b16 %v555, %v554
    %v570 = vpack.c.b16 %v557, %v556
    %v571 = vpack.c.b16 %v559, %v558
    %v572 = vpack.c.b16 %v561, %v560
    %v573 = vpack.c.b16 %v563, %v562
    %v574 = vpack.c.b16 %v565, %v564
    %v575 = vpack.c.b16 %v567, %v566
    %584 = vmatprep.subr.bf16.mxu0 0
    %585 = vmatpush1.bf16.msra.mxu0 %v575
    %586 = vmatprep.subr.bf16.mxu0 0
    %587 = vmatpush1.bf16.msra.mxu0 %v574
    %588 = vmatprep.subr.bf16.mxu0 0
    %589 = vmatpush1.bf16.msra.mxu0 %v573
    %590 = vmatprep.subr.bf16.mxu0 0
    %591 = vmatpush1.bf16.msra.mxu0 %v572
    %592 = vmatprep.subr.bf16.mxu0 0
    %593 = vmatpush1.bf16.msra.mxu0 %v571
    %594 = vmatprep.subr.bf16.mxu0 0
    %595 = vmatpush1.bf16.msra.mxu0 %v570
    %596 = vmatprep.subr.bf16.mxu0 0
    %597 = vmatpush1.bf16.msra.mxu0 %v569
    %598 = vmatprep.subr.bf16.mxu0 0
    %599 = vmatpush1.bf16.msra.mxu0 %v568
    %600 = vmatprep.subr.bf16.mxu0 0
    %601 = vmatpush2.bf16.msra.mxu0 0
    %602 = vmatprep.subr.bf16.mxu0 0
    %603 = vmatpush2.bf16.msra.mxu0 0
    %604 = vmatprep.subr.bf16.mxu0 0
    %605 = vmatpush2.bf16.msra.mxu0 0
    %606 = vmatprep.subr.bf16.mxu0 0
    %607 = vmatpush2.bf16.msra.mxu0 0
    %608 = vmatprep.subr.bf16.mxu0 0
    %609 = vmatpush2.bf16.msra.mxu0 0
    %610 = vmatprep.subr.bf16.mxu0 0
    %611 = vmatpush2.bf16.msra.mxu0 0
    %612 = vmatprep.subr.bf16.mxu0 0
    %613 = vmatpush2.bf16.msra.mxu0 0
    %614 = vmatprep.subr.bf16.mxu0 0
    %615 = vmatpush2.bf16.msra.mxu0 0
    %616 = vmatprep.mubr.bf16.mxu0 0
    %617 = vmatmul.mubr.bf16.gmra.mxu0 %v492
    %v618 = vpop.f32.mrf.mxu0
    %v619 = vadd.f32 0.0, %v618
    %v620 = vpop.f32.mrf.mxu0
    %v621 = vpop.f32.mrf.mxu0
    %v622 = vadd.f32 0.0, %v621
    %v623 = vpop.f32.mrf.mxu0
    %624 = vmatprep.mubr.bf16.mxu0 0
    %625 = vmatmul.mubr.bf16.gmra.mxu0 %v493
    %v626 = vpop.f32.mrf.mxu0
    %v627 = vadd.f32 0.0, %v626
    %v628 = vpop.f32.mrf.mxu0
    %v629 = vpop.f32.mrf.mxu0
    %v630 = vadd.f32 0.0, %v629
    %v631 = vpop.f32.mrf.mxu0
    %632 = vmatprep.mubr.bf16.mxu0 0
    %633 = vmatmul.mubr.bf16.gmra.mxu0 %v494
    %v634 = vpop.f32.mrf.mxu0
    %v635 = vadd.f32 0.0, %v634
    %v636 = vpop.f32.mrf.mxu0
    %v637 = vpop.f32.mrf.mxu0
    %v638 = vadd.f32 0.0, %v637
    %v639 = vpop.f32.mrf.mxu0
    %640 = vmatprep.mubr.bf16.mxu0 0
    %641 = vmatmul.mubr.bf16.gmra.mxu0 %v495
    %v642 = vpop.f32.mrf.mxu0
    %v643 = vadd.f32 0.0, %v642
    %v644 = vpop.f32.mrf.mxu0
    %v645 = vpop.f32.mrf.mxu0
    %v646 = vadd.f32 0.0, %v645
    %v647 = vpop.f32.mrf.mxu0
    %648 = vmatprep.mubr.bf16.mxu0 0
    %649 = vmatmul.mubr.bf16.gmra.mxu0 %v496
    %v650 = vpop.f32.mrf.mxu0
    %v651 = vadd.f32 0.0, %v650
    %v652 = vpop.f32.mrf.mxu0
    %v653 = vpop.f32.mrf.mxu0
    %v654 = vadd.f32 0.0, %v653
    %v655 = vpop.f32.mrf.mxu0
    %656 = vmatprep.mubr.bf16.mxu0 0
    %657 = vmatmul.mubr.bf16.gmra.mxu0 %v497
    %v658 = vpop.f32.mrf.mxu0
    %v659 = vadd.f32 0.0, %v658
    %v660 = vpop.f32.mrf.mxu0
    %v661 = vpop.f32.mrf.mxu0
    %v662 = vadd.f32 0.0, %v661
    %v663 = vpop.f32.mrf.mxu0
    %664 = vmatprep.mubr.bf16.mxu0 0
    %665 = vmatmul.mubr.bf16.gmra.mxu0 %v498
    %v666 = vpop.f32.mrf.mxu0
    %v667 = vadd.f32 0.0, %v666
    %v668 = vpop.f32.mrf.mxu0
    %v669 = vpop.f32.mrf.mxu0
    %v670 = vadd.f32 0.0, %v669
    %v671 = vpop.f32.mrf.mxu0
    %672 = vmatprep.mubr.bf16.mxu0 0
    %673 = vmatmul.mubr.bf16.gmra.mxu0 %v499
    %v674 = vpop.f32.mrf.mxu0
    %v675 = vadd.f32 0.0, %v674
    %v676 = vpop.f32.mrf.mxu0
    %v677 = vpop.f32.mrf.mxu0
    %v678 = vadd.f32 0.0, %v677
    %v679 = vpop.f32.mrf.mxu0
    %680 = vdwg.mxu0
    %v681 = vadd.f32 %v500, %v619
    %v682 = vadd.f32 %v501, %v622
    %v683 = vadd.f32 %v502, %v627
    %v684 = vadd.f32 %v503, %v630
    %v685 = vadd.f32 %v504, %v635
    %v686 = vadd.f32 %v505, %v638
    %v687 = vadd.f32 %v506, %v643
    %v688 = vadd.f32 %v507, %v646
    %v689 = vadd.f32 %v508, %v651
    %v690 = vadd.f32 %v509, %v654
    %v691 = vadd.f32 %v510, %v659
    %v692 = vadd.f32 %v511, %v662
    %v693 = vadd.f32 %v512, %v667
    %v694 = vadd.f32 %v513, %v670
    %v695 = vadd.f32 %v514, %v675
    %v696 = vadd.f32 %v515, %v678
    %697 = vst [vmem:[#allocation3] sm:$0xff] %v681
    %698 = vst [vmem:[#allocation3 + $0x8] sm:$0xff] %v682
    %699 = vst [vmem:[#allocation3 + $0x10] sm:$0xff] %v683
    %700 = vst [vmem:[#allocation3 + $0x18] sm:$0xff] %v684
    %701 = vst [vmem:[#allocation3 + $0x20] sm:$0xff] %v685
    %702 = vst [vmem:[#allocation3 + $0x28] sm:$0xff] %v686
    %703 = vst [vmem:[#allocation3 + $0x30] sm:$0xff] %v687
    %704 = vst [vmem:[#allocation3 + $0x38] sm:$0xff] %v688
    %705 = vst [vmem:[#allocation3 + $0x40] sm:$0xff] %v689
    %706 = vst [vmem:[#allocation3 + $0x48] sm:$0xff] %v690
    %707 = vst [vmem:[#allocation3 + $0x50] sm:$0xff] %v691
    %708 = vst [vmem:[#allocation3 + $0x58] sm:$0xff] %v692
    %709 = vst [vmem:[#allocation3 + $0x60] sm:$0xff] %v693
    %710 = vst [vmem:[#allocation3 + $0x68] sm:$0xff] %v694
    %711 = vst [vmem:[#allocation3 + $0x70] sm:$0xff] %v695
    %712 = vst [vmem:[#allocation3 + $0x78] sm:$0xff] %v696
    // Predicated region
    $region34: #{tpu_custom_call.1} parent=1 // pred_check
      %p713 = pneg %p467
    $region35: #{tpu_custom_call.1} parent=1 // pred_check_branch
      %715 = sbr.rel (%p713) target = $region37
    $region36: #{tpu_custom_call.1} parent=1 // pred_region
      %v716 = vld [vmem:[#allocation3] sm:$0xff]
      %v717 = vld [vmem:[#allocation3 + $0x8] sm:$0xff]
      %v718 = vld [vmem:[#allocation3 + $0x10] sm:$0xff]
      %v719 = vld [vmem:[#allocation3 + $0x18] sm:$0xff]
      %v720 = vld [vmem:[#allocation3 + $0x20] sm:$0xff]
      %v721 = vld [vmem:[#allocation3 + $0x28] sm:$0xff]
      %v722 = vld [vmem:[#allocation3 + $0x30] sm:$0xff]
      %v723 = vld [vmem:[#allocation3 + $0x38] sm:$0xff]
      %v724 = vld [vmem:[#allocation3 + $0x40] sm:$0xff]
      %v725 = vld [vmem:[#allocation3 + $0x48] sm:$0xff]
      %v726 = vld [vmem:[#allocation3 + $0x50] sm:$0xff]
      %v727 = vld [vmem:[#allocation3 + $0x58] sm:$0xff]
      %v728 = vld [vmem:[#allocation3 + $0x60] sm:$0xff]
      %v729 = vld [vmem:[#allocation3 + $0x68] sm:$0xff]
      %v730 = vld [vmem:[#allocation3 + $0x70] sm:$0xff]
      %v731 = vld [vmem:[#allocation3 + $0x78] sm:$0xff]
      %v732 = vld [vmem:[%s5] sm:$0xff]
      %v733 = vld [vmem:[%s5 + $0x8] sm:$0xff]
      %v734 = vld [vmem:[%s5 + $0x10] sm:$0xff]
      %v735 = vld [vmem:[%s5 + $0x18] sm:$0xff]
      %v736 = vld [vmem:[%s5 + $0x20] sm:$0xff]
      %v737 = vld [vmem:[%s5 + $0x28] sm:$0xff]
      %v738 = vld [vmem:[%s5 + $0x30] sm:$0xff]
      %v739 = vld [vmem:[%s5 + $0x38] sm:$0xff]
      %v740 = vld [vmem:[%s5 + $0x40] sm:$0xff]
      %v741 = vld [vmem:[%s5 + $0x48] sm:$0xff]
      %v742 = vld [vmem:[%s5 + $0x50] sm:$0xff]
      %v743 = vld [vmem:[%s5 + $0x58] sm:$0xff]
      %v744 = vld [vmem:[%s5 + $0x60] sm:$0xff]
      %v745 = vld [vmem:[%s5 + $0x68] sm:$0xff]
      %v746 = vld [vmem:[%s5 + $0x70] sm:$0xff]
      %v747 = vld [vmem:[%s5 + $0x78] sm:$0xff]
      %749 = vset.pattern.permute.xlu0 0
      %750 = vperm.xlu0 %749, %v732
      %v751 = vpop.permute.xlu0 %750
      %754 = vset.pattern.permute.xlu0 0
      %755 = vperm.xlu0 %754, %v733
      %v756 = vpop.permute.xlu0 %755
      %759 = vset.pattern.permute.xlu0 0
      %760 = vperm.xlu0 %759, %v734
      %v761 = vpop.permute.xlu0 %760
      %764 = vset.pattern.permute.xlu0 0
      %765 = vperm.xlu0 %764, %v735
      %v766 = vpop.permute.xlu0 %765
      %769 = vset.pattern.permute.xlu0 0
      %770 = vperm.xlu0 %769, %v736
      %v771 = vpop.permute.xlu0 %770
      %774 = vset.pattern.permute.xlu0 0
      %775 = vperm.xlu0 %774, %v737
      %v776 = vpop.permute.xlu0 %775
      %779 = vset.pattern.permute.xlu0 0
      %780 = vperm.xlu0 %779, %v738
      %v781 = vpop.permute.xlu0 %780
      %784 = vset.pattern.permute.xlu0 0
      %785 = vperm.xlu0 %784, %v739
      %v786 = vpop.permute.xlu0 %785
      %789 = vset.pattern.permute.xlu0 0
      %790 = vperm.xlu0 %789, %v740
      %v791 = vpop.permute.xlu0 %790
      %794 = vset.pattern.permute.xlu0 0
      %795 = vperm.xlu0 %794, %v741
      %v796 = vpop.permute.xlu0 %795
      %799 = vset.pattern.permute.xlu0 0
      %800 = vperm.xlu0 %799, %v742
      %v801 = vpop.permute.xlu0 %800
      %804 = vset.pattern.permute.xlu0 0
      %805 = vperm.xlu0 %804, %v743
      %v806 = vpop.permute.xlu0 %805
      %809 = vset.pattern.permute.xlu0 0
      %810 = vperm.xlu0 %809, %v744
      %v811 = vpop.permute.xlu0 %810
      %814 = vset.pattern.permute.xlu0 0
      %815 = vperm.xlu0 %814, %v745
      %v816 = vpop.permute.xlu0 %815
      %819 = vset.pattern.permute.xlu0 0
      %820 = vperm.xlu0 %819, %v746
      %v821 = vpop.permute.xlu0 %820
      %824 = vset.pattern.permute.xlu0 0
      %825 = vperm.xlu0 %824, %v747
      %v826 = vpop.permute.xlu0 %825
      %v828 = vmul.f32 %v716, %v751
      %v829 = vmul.f32 %v717, %v756
      %v830 = vmul.f32 %v718, %v761
      %v831 = vmul.f32 %v719, %v766
      %v832 = vmul.f32 %v720, %v771
      %v833 = vmul.f32 %v721, %v776
      %v834 = vmul.f32 %v722, %v781
      %v835 = vmul.f32 %v723, %v786
      %v836 = vmul.f32 %v724, %v791
      %v837 = vmul.f32 %v725, %v796
      %v838 = vmul.f32 %v726, %v801
      %v839 = vmul.f32 %v727, %v806
      %v840 = vmul.f32 %v728, %v811
      %v841 = vmul.f32 %v729, %v816
      %v842 = vmul.f32 %v730, %v821
      %v843 = vmul.f32 %v731, %v826
      %v844 = vld [vmem:[%s6] sm:$0x1]
      %v846 = vlaneseq
      %v847 = vshrl.u32 %v846, 7
      %v848 = vsub.s32 0, %v847
      %v849 = vrot.slane %v844, %v848
      %v851 = vadd.f32 %v828, %v849
      %v852 = vadd.f32 %v829, %v849
      %v853 = vadd.f32 %v830, %v849
      %v854 = vadd.f32 %v831, %v849
      %v855 = vadd.f32 %v832, %v849
      %v856 = vadd.f32 %v833, %v849
      %v857 = vadd.f32 %v834, %v849
      %v858 = vadd.f32 %v835, %v849
      %v859 = vadd.f32 %v836, %v849
      %v860 = vadd.f32 %v837, %v849
      %v861 = vadd.f32 %v838, %v849
      %v862 = vadd.f32 %v839, %v849
      %v863 = vadd.f32 %v840, %v849
      %v864 = vadd.f32 %v841, %v849
      %v865 = vadd.f32 %v842, %v849
      %v866 = vadd.f32 %v843, %v849
      %v867 = vmax.f32 %v851, 0.0
      %v868 = vmax.f32 %v852, 0.0
      %v869 = vmax.f32 %v853, 0.0
      %v870 = vmax.f32 %v854, 0.0
      %v871 = vmax.f32 %v855, 0.0
      %v872 = vmax.f32 %v856, 0.0
      %v873 = vmax.f32 %v857, 0.0
      %v874 = vmax.f32 %v858, 0.0
      %v875 = vmax.f32 %v859, 0.0
      %v876 = vmax.f32 %v860, 0.0
      %v877 = vmax.f32 %v861, 0.0
      %v878 = vmax.f32 %v862, 0.0
      %v879 = vmax.f32 %v863, 0.0
      %v880 = vmax.f32 %v864, 0.0
      %v881 = vmax.f32 %v865, 0.0
      %v882 = vmax.f32 %v866, 0.0
      %v883 = vpack.c.bf16 %v868, %v867
      %v884 = vpack.c.bf16 %v870, %v869
      %v885 = vpack.c.bf16 %v872, %v871
      %v886 = vpack.c.bf16 %v874, %v873
      %v887 = vpack.c.bf16 %v876, %v875
      %v888 = vpack.c.bf16 %v878, %v877
      %v889 = vpack.c.bf16 %v880, %v879
      %v890 = vpack.c.bf16 %v882, %v881
      %v899 = vunpack.c.l.b16 %v883
      %v900 = vunpack.c.h.b16 %v883
      %v901 = vunpack.c.l.b16 %v884
      %v902 = vunpack.c.h.b16 %v884
      %v903 = vunpack.c.l.b16 %v885
      %v904 = vunpack.c.h.b16 %v885
      %v905 = vunpack.c.l.b16 %v886
      %v906 = vunpack.c.h.b16 %v886
      %v907 = vunpack.c.l.b16 %v887
      %v908 = vunpack.c.h.b16 %v887
      %v909 = vunpack.c.l.b16 %v888
      %v910 = vunpack.c.h.b16 %v888
      %v911 = vunpack.c.l.b16 %v889
      %v912 = vunpack.c.h.b16 %v889
      %v913 = vunpack.c.l.b16 %v890
      %v914 = vunpack.c.h.b16 %v890
      %v915 = vpack.c.b16 %v899, %v899
      %v916 = vpack.c.b16 %v900, %v900
      %v917 = vpack.c.b16 %v901, %v901
      %v918 = vpack.c.b16 %v902, %v902
      %v919 = vpack.c.b16 %v903, %v903
      %v920 = vpack.c.b16 %v904, %v904
      %v921 = vpack.c.b16 %v905, %v905
      %v922 = vpack.c.b16 %v906, %v906
      %v923 = vpack.c.b16 %v907, %v907
      %v924 = vpack.c.b16 %v908, %v908
      %v925 = vpack.c.b16 %v909, %v909
      %v926 = vpack.c.b16 %v910, %v910
      %v927 = vpack.c.b16 %v911, %v911
      %v928 = vpack.c.b16 %v912, %v912
      %v929 = vpack.c.b16 %v913, %v913
      %v930 = vpack.c.b16 %v914, %v914
      %947 = vst [vmem:[#allocation6] sm:$0xf] %v915
      %948 = vst [vmem:[#allocation6 + $0x4] sm:$0xf] %v916
      %949 = vst [vmem:[#allocation6 + $0x8] sm:$0xf] %v917
      %950 = vst [vmem:[#allocation6 + $0xc] sm:$0xf] %v918
      %951 = vst [vmem:[#allocation6 + $0x10] sm:$0xf] %v919
      %952 = vst [vmem:[#allocation6 + $0x14] sm:$0xf] %v920
      %953 = vst [vmem:[#allocation6 + $0x18] sm:$0xf] %v921
      %954 = vst [vmem:[#allocation6 + $0x1c] sm:$0xf] %v922
      %955 = vst [vmem:[#allocation6 + $0x20] sm:$0xf] %v923
      %956 = vst [vmem:[#allocation6 + $0x24] sm:$0xf] %v924
      %957 = vst [vmem:[#allocation6 + $0x28] sm:$0xf] %v925
      %958 = vst [vmem:[#allocation6 + $0x2c] sm:$0xf] %v926
      %959 = vst [vmem:[#allocation6 + $0x30] sm:$0xf] %v927
      %960 = vst [vmem:[#allocation6 + $0x34] sm:$0xf] %v928
      %961 = vst [vmem:[#allocation6 + $0x38] sm:$0xf] %v929
      %962 = vst [vmem:[#allocation6 + $0x3c] sm:$0xf] %v930
    $region37: #{tpu_custom_call.1} parent=1 // pred_fallthru
      _
    // Predicated region
    $region38: #{tpu_custom_call.1} parent=1 // pred_check
      _
    $region39: #{tpu_custom_call.1} parent=1 // pred_check_branch
      %964 = sbr.rel (0) target = $region41
    $region40: #{tpu_custom_call.1} parent=1 // pred_region
      %s966 = ssub.s32 1024, 1024
      %967 = vsyncadd [#allocation7], %s966
      %s968 = sshll.u32 [#allocation6], 4
      %s969 = int_to_ptr.vmem [resolvable:$true] %s968
      %974 = dma.vmem_to_hbm [thread:$0]  %s969, 1024, %s7, [#allocation7], 64, 64, 4
    $region41: #{tpu_custom_call.1} parent=1 // pred_fallthru
      _
    // Predicated region
    $region42: #{tpu_custom_call.1} parent=1 // pred_check
      _
    $region43: #{tpu_custom_call.1} parent=1 // pred_check_branch
      %976 = sbr.rel (0) target = $region45
    $region44: #{tpu_custom_call.1} parent=1 // pred_region
      %977 = dma.done [#allocation7], 1024
    $region45: #{tpu_custom_call.1} parent=1 // pred_fallthru
      _
    %978 = vsyncpa [#allocation7], 1

</llo_original>
